<compile_context>
chip_gen: v5e
topology: v5e:2x2
jax: 0.10.0
libtpu: 0.0.40
codegen_flags: <defaults>
</compile_context>

<pallas_src>
import functools

import jax
import jax.numpy as jnp
from jax.experimental import pallas as pl
from jax.experimental.pallas import tpu as pltpu


def qnet_kernel(x_ref, w1_ref, b1_ref, w2_ref, b2_ref, o_ref):
    # Cast x to the weight dtype in-kernel (no extra XLA pass over x in HBM).
    x = x_ref[...]
    if x.dtype != w1_ref.dtype:
        x = x.astype(w1_ref.dtype)
    # Two MXU matmuls with f32 accumulation; VPU bias-add / ReLU in f32.
    h = jnp.dot(x, w1_ref[...], preferred_element_type=jnp.float32)   # [TB,128]
    h = jnp.maximum(h + b1_ref[...], 0.0)                              # bias+ReLU
    out = jnp.dot(h.astype(w2_ref.dtype), w2_ref[...],
                  preferred_element_type=jnp.float32)                  # [TB, A]
    o_ref[...] = out + b2_ref[...]                                     # bias


def _round_up(x, m):
    return ((x + m - 1) // m) * m


@functools.partial(jax.jit, static_argnames=("block_b",))
def qnet_forward(x, w1, b1, w2, b2, *, block_b=256):
    """Forward pass of Qnet.

    x:  [B, 64]  f32 (features on the lane axis)
    w1: [64, 128], b1: [1, 128]       (pre-transposed vs. PyTorch [out, in])
    w2: [128, A], b2: [1, A]          (weights may be pre-cast to bf16 via
                                       prepare_bf16_params)
    returns [B, A] f32
    """
    batch, in_dim = x.shape
    assert in_dim == 64, "Qnet expects 64 input features"
    action_size = w2.shape[1]

    # Batch tile: multiple of 8 sublanes, capped at block_b.  No wrapper pad;
    # Pallas handles the partial last block via the cdiv grid.
    tb = min(block_b, _round_up(batch, 8))
    tb = _round_up(tb, 8)
    grid = (pl.cdiv(batch, tb),)

    out_shape = jax.ShapeDtypeStruct((batch, action_size), jnp.float32)

    return pl.pallas_call(
        qnet_kernel,
        out_shape=out_shape,
        grid=grid,
        in_specs=[
            pl.BlockSpec((tb, 64), lambda i: (i, 0)),                 # x: batch-tiled
            pl.BlockSpec((64, 128), lambda i: (0, 0)),                # w1: resident
            pl.BlockSpec((1, 128), lambda i: (0, 0)),                 # b1: resident
            pl.BlockSpec((128, action_size), lambda i: (0, 0)),       # w2: resident
            pl.BlockSpec((1, action_size), lambda i: (0, 0)),         # b2: resident
        ],
        out_specs=pl.BlockSpec((tb, action_size), lambda i: (i, 0)),  # narrow, unsliced
        compiler_params=pltpu.CompilerParams(
            dimension_semantics=("parallel",)),                       # 2 TCs on v7x
    )(x, w1, b1, w2, b2)


def prepare_bf16_params(w1, b1, w2, b2):
    """One-time cast of matmul weights to bf16 (biases stay f32 for the f32
    epilogue).  Call once outside the per-step path; the kernel casts x to the
    weight dtype internally."""
    return w1.astype(jnp.bfloat16), b1, w2.astype(jnp.bfloat16), b2


def init_params(key, action_size):
    """Deterministic init mimicking torch.nn.Linear's U(-1/sqrt(fan_in), +)."""
    k1, k2, k3, k4 = jax.random.split(key, 4)
    bound1 = 1.0 / jnp.sqrt(64.0)
    bound2 = 1.0 / jnp.sqrt(128.0)
    # Stored as [in, out] (transpose of PyTorch's [out, in]).
    w1 = jax.random.uniform(k1, (64, 128), jnp.float32, -bound1, bound1)
    b1 = jax.random.uniform(k2, (1, 128), jnp.float32, -bound1, bound1)
    w2 = jax.random.uniform(k3, (128, action_size), jnp.float32, -bound2, bound2)
    b2 = jax.random.uniform(k4, (1, action_size), jnp.float32, -bound2, bound2)
    return w1, b1, w2, b2


def _reference(x, w1, b1, w2, b2):
    return jnp.maximum(x @ w1 + b1, 0.0) @ w2 + b2


if __name__ == "__main__":
    key = jax.random.PRNGKey(0)
    k_params, k_x = jax.random.split(key)

    action_size = 4          # FrozenLake has 4 actions
    w1, b1, w2, b2 = init_params(k_params, action_size)

    # --- small single-inference batch (FrozenLake one-hot states, 8x8 grid).
    batch = 8
    states = jnp.arange(batch) % 64
    x_small = jax.nn.one_hot(states, 64, dtype=jnp.float32)      # [8, 64]

    out_small = qnet_forward(x_small, w1, b1, w2, b2)
    jax.block_until_ready(out_small)
    ref_small = _reference(x_small, w1, b1, w2, b2)
    assert out_small.shape == (batch, action_size)
    assert jnp.allclose(out_small, ref_small, atol=1e-5, rtol=1e-5)

    # --- training-style batch, non-multiple of the tile to exercise the
    #     cdiv grid + partial last block (no wrapper-side padding).
    mid_batch = 200
    mid_states = jax.random.randint(k_x, (mid_batch,), 0, 64)
    x_mid = jax.nn.one_hot(mid_states, 64, dtype=jnp.float32)    # [200, 64]

    out_mid = qnet_forward(x_mid, w1, b1, w2, b2, block_b=64)    # grid = 4
    jax.block_until_ready(out_mid)
    ref_mid = _reference(x_mid, w1, b1, w2, b2)
    assert out_mid.shape == (mid_batch, action_size)
    assert jnp.allclose(out_mid, ref_mid, atol=1e-5, rtol=1e-5)

    # --- bf16-weight path: weights cast ONCE outside the per-call path;
    #     x stays f32 in HBM and is cast inside the kernel.
    w1b, b1b, w2b, b2b = prepare_bf16_params(w1, b1, w2, b2)
    out_bf16 = qnet_forward(x_mid, w1b, b1b, w2b, b2b, block_b=64)
    jax.block_until_ready(out_bf16)
    assert jnp.allclose(out_bf16, ref_mid, atol=3e-2, rtol=3e-2)

    print("KERNEL_OK")
</pallas_src>

<mosaic_0001>
module attributes {stable_mosaic.version = 11 : i64} {
  func.func @qnet_kernel(%arg0: i32, %arg1: memref<8x64xf32, #tpu.memory_space<vmem>>, %arg2: memref<64x128xf32, #tpu.memory_space<vmem>>, %arg3: memref<1x128xf32, #tpu.memory_space<vmem>>, %arg4: memref<128x4xf32, #tpu.memory_space<vmem>>, %arg5: memref<1x4xf32, #tpu.memory_space<vmem>>, %arg6: memref<8x4xf32, #tpu.memory_space<vmem>>) attributes {dimension_semantics = [#tpu.dimension_semantics<parallel>], iteration_bounds = array<i64: 1>, scalar_prefetch = 0 : i64, scratch_operands = 0 : i64, tpu.core_type = #tpu.core_type<tc>, window_params = [{transform_indices = @transform_0, window_bounds = array<i64: 8, 64>}, {pipeline_mode = #tpu.pipeline_mode<synchronous>, transform_indices = @transform_1, window_bounds = array<i64: 64, 128>}, {pipeline_mode = #tpu.pipeline_mode<synchronous>, transform_indices = @transform_2, window_bounds = array<i64: 1, 128>}, {pipeline_mode = #tpu.pipeline_mode<synchronous>, transform_indices = @transform_3, window_bounds = array<i64: 128, 4>}, {pipeline_mode = #tpu.pipeline_mode<synchronous>, transform_indices = @transform_4, window_bounds = array<i64: 1, 4>}, {transform_indices = @transform_5, window_bounds = array<i64: 8, 4>}]} {
    %c0 = arith.constant 0 : index
    %c0_0 = arith.constant 0 : index
    %0 = vector.load %arg1[%c0, %c0_0] : memref<8x64xf32, #tpu.memory_space<vmem>>, vector<8x64xf32>
    %c0_1 = arith.constant 0 : index
    %c0_2 = arith.constant 0 : index
    %1 = vector.load %arg2[%c0_1, %c0_2] : memref<64x128xf32, #tpu.memory_space<vmem>>, vector<64x128xf32>
    %cst = arith.constant dense<0.000000e+00> : vector<8x128xf32>
    %2 = tpu.matmul %0, %1, %cst {dimension_numbers = #tpu.dot_dimension_numbers<[1], [0], [0], [1], [0, 0, 1, 1], [], []>} : vector<8x64xf32>, vector<64x128xf32>, vector<8x128xf32> -> vector<8x128xf32>
    %c0_3 = arith.constant 0 : index
    %c0_4 = arith.constant 0 : index
    %3 = vector.load %arg3[%c0_3, %c0_4] : memref<1x128xf32, #tpu.memory_space<vmem>>, vector<1x128xf32>
    %4 = vector.broadcast %3 : vector<1x128xf32> to vector<8x128xf32>
    %5 = arith.addf %2, %4 : vector<8x128xf32>
    %cst_5 = arith.constant 0.000000e+00 : f32
    %6 = vector.broadcast %cst_5 : f32 to vector<8x128xf32>
    %7 = arith.maximumf %5, %6 : vector<8x128xf32>
    %c0_6 = arith.constant 0 : index
    %c0_7 = arith.constant 0 : index
    %8 = vector.load %arg4[%c0_6, %c0_7] : memref<128x4xf32, #tpu.memory_space<vmem>>, vector<128x4xf32>
    %cst_8 = arith.constant dense<0.000000e+00> : vector<8x4xf32>
    %9 = tpu.matmul %7, %8, %cst_8 {dimension_numbers = #tpu.dot_dimension_numbers<[1], [0], [0], [1], [0, 0, 1, 1], [], []>} : vector<8x128xf32>, vector<128x4xf32>, vector<8x4xf32> -> vector<8x4xf32>
    %c0_9 = arith.constant 0 : index
    %c0_10 = arith.constant 0 : index
    %10 = vector.load %arg5[%c0_9, %c0_10] : memref<1x4xf32, #tpu.memory_space<vmem>>, vector<1x4xf32>
    %11 = vector.broadcast %10 : vector<1x4xf32> to vector<8x4xf32>
    %12 = arith.addf %9, %11 : vector<8x4xf32>
    %c0_11 = arith.constant 0 : index
    %c0_12 = arith.constant 0 : index
    %13 = vector.load %arg6[%c0_11, %c0_12] : memref<8x4xf32, #tpu.memory_space<vmem>>, vector<8x4xf32>
    tpu.vector_store %arg6[%c0_11, %c0_12], %12 {strides = array<i32>} : memref<8x4xf32, #tpu.memory_space<vmem>>, vector<8x4xf32>,
    return
  }
  func.func @transform_0(%arg0: i32) -> (i32, i32) {
    %c0_i32 = arith.constant 0 : i32
    %c0_i32_0 = arith.constant 0 : i32
    return %arg0, %c0_i32 : i32, i32
  }
  func.func @transform_1(%arg0: i32) -> (i32, i32) {
    %c0_i32 = arith.constant 0 : i32
    %c0_i32_0 = arith.constant 0 : i32
    %c0_i32_1 = arith.constant 0 : i32
    return %c0_i32, %c0_i32_0 : i32, i32
  }
  func.func @transform_2(%arg0: i32) -> (i32, i32) {
    %c0_i32 = arith.constant 0 : i32
    %c0_i32_0 = arith.constant 0 : i32
    %c0_i32_1 = arith.constant 0 : i32
    return %c0_i32, %c0_i32_0 : i32, i32
  }
  func.func @transform_3(%arg0: i32) -> (i32, i32) {
    %c0_i32 = arith.constant 0 : i32
    %c0_i32_0 = arith.constant 0 : i32
    %c0_i32_1 = arith.constant 0 : i32
    return %c0_i32, %c0_i32_0 : i32, i32
  }
  func.func @transform_4(%arg0: i32) -> (i32, i32) {
    %c0_i32 = arith.constant 0 : i32
    %c0_i32_0 = arith.constant 0 : i32
    %c0_i32_1 = arith.constant 0 : i32
    return %c0_i32, %c0_i32_0 : i32, i32
  }
  func.func @transform_5(%arg0: i32) -> (i32, i32) {
    %c0_i32 = arith.constant 0 : i32
    %c0_i32_0 = arith.constant 0 : i32
    return %arg0, %c0_i32 : i32, i32
  }
}

</mosaic_0001>

<llo_original>
// kernel: qnet_forward.1
$region0: #{qnet_forward.1}
  #allocation0 [shape = 'u32[]', space=smem, size = 0x4, offset = 0x4, fixed_abs, tag = 'smem constant byte address 0x4 - core index']
  #allocation1 [shape = 'u32[72,128]{1,0:T(1,128)}', space=vmem, size = 0x9000, scoped, tag = 'internal scratch']
  %s0 = inlined_call_operand.vmem [shape: f32[8,64], index: 0, kind: input, shape index: {}]
  %s1 = inlined_call_operand.vmem [shape: f32[64,128], index: 1, kind: input, shape index: {}]
  %s2 = inlined_call_operand.vmem [shape: f32[1,128], index: 2, kind: input, shape index: {}]
  %s3 = inlined_call_operand.vmem [shape: f32[128,4], index: 3, kind: input, shape index: {}]
  %s4 = inlined_call_operand.vmem [shape: f32[1,4], index: 4, kind: input, shape index: {}]
  %s5 = inlined_call_operand.vmem [shape: f32[8,4], index: 5, kind: output, shape index: {}]
  %s6 = sld [smem:[#allocation0]]
  $region30: #{qnet_forward.1} parent=0
    _
  %s8 = ssub.s32 1, %s6
  %s9 = scalar_select 0, %s8, %s6
  // Predicated region
  $region2: #{qnet_forward.1} parent=0 // pred_check
    _
  $region3: #{qnet_forward.1} parent=0 // pred_check_branch
    %11 = sbr.rel (0) target = $region5
  $region4: #{qnet_forward.1} parent=0 // pred_region
    _
  $region5: #{qnet_forward.1} parent=0 // pred_fallthru
    _
  // Predicated region
  $region6: #{qnet_forward.1} parent=0 // pred_check
    _
  $region7: #{qnet_forward.1} parent=0 // pred_check_branch
    %13 = sbr.rel (0) target = $region9
  $region8: #{qnet_forward.1} parent=0 // pred_region
    _
  $region9: #{qnet_forward.1} parent=0 // pred_fallthru
    _
  // Predicated region
  $region10: #{qnet_forward.1} parent=0 // pred_check
    _
  $region11: #{qnet_forward.1} parent=0 // pred_check_branch
    %15 = sbr.rel (0) target = $region13
  $region12: #{qnet_forward.1} parent=0 // pred_region
    _
  $region13: #{qnet_forward.1} parent=0 // pred_fallthru
    _
  // Predicated region
  $region14: #{qnet_forward.1} parent=0 // pred_check
    _
  $region15: #{qnet_forward.1} parent=0 // pred_check_branch
    %17 = sbr.rel (0) target = $region17
  $region16: #{qnet_forward.1} parent=0 // pred_region
    _
  $region17: #{qnet_forward.1} parent=0 // pred_fallthru
    _
  // Predicated region
  $region18: #{qnet_forward.1} parent=0 // pred_check
    _
  $region19: #{qnet_forward.1} parent=0 // pred_check_branch
    %19 = sbr.rel (0) target = $region21
  $region20: #{qnet_forward.1} parent=0 // pred_region
    _
  $region21: #{qnet_forward.1} parent=0 // pred_fallthru
    _
  %v20 = vld [vmem:[%s0] sm:$0xff]
  %v21 = vld [vmem:[%s1] sm:$0xff]
  %v22 = vld [vmem:[%s1 + $0x8] sm:$0xff]
  %v23 = vld [vmem:[%s1 + $0x10] sm:$0xff]
  %v24 = vld [vmem:[%s1 + $0x18] sm:$0xff]
  %v25 = vld [vmem:[%s1 + $0x20] sm:$0xff]
  %v26 = vld [vmem:[%s1 + $0x28] sm:$0xff]
  %v27 = vld [vmem:[%s1 + $0x30] sm:$0xff]
  %v28 = vld [vmem:[%s1 + $0x38] sm:$0xff]
  %v29 = vld [vmem:[%s2] sm:$0x1]
  %v31 = vperm.slane %v29, 0
  %vm33 = vcmask 523264
  %v35 = vsel %vm33, %v20, 0
  %37 = vmatpush.msra.mxu0 0.0
  %38 = vmatpush.msra.mxu0 0.0
  %39 = vmatpush.msra.mxu0 0.0
  %40 = vmatpush.msra.mxu0 0.0
  %41 = vmatpush.msra.mxu0 0.0
  %42 = vmatpush.msra.mxu0 0.0
  %43 = vmatpush.msra.mxu0 0.0
  %44 = vmatpush.msra.mxu0 0.0
  %45 = vmatpush.msra.mxu0 %v28
  %46 = vmatpush.msra.mxu0 %v27
  %47 = vmatpush.msra.mxu0 %v26
  %48 = vmatpush.msra.mxu0 %v25
  %49 = vmatpush.msra.mxu0 %v24
  %50 = vmatpush.msra.mxu0 %v23
  %51 = vmatpush.msra.mxu0 %v22
  %52 = vmatpush.msra.mxu0 %v21
  %53 = vmatmul.f32.gmra.mxu0 %v35
  %v54 = vpop.f32.mrf.mxu0
  %v55 = vadd.f32 %v31, %v54
  %56 = vdwg.mxu0
  %v57 = vmax.f32 %v55, 0.0
  %v58 = vld [vmem:[%s3] sm:$0xff]
  %v59 = vld [vmem:[%s3 + $0x8] sm:$0xff]
  %v60 = vld [vmem:[%s3 + $0x10] sm:$0xff]
  %v61 = vld [vmem:[%s3 + $0x18] sm:$0xff]
  %v62 = vld [vmem:[%s3 + $0x20] sm:$0xff]
  %v63 = vld [vmem:[%s3 + $0x28] sm:$0xff]
  %v64 = vld [vmem:[%s3 + $0x30] sm:$0xff]
  %v65 = vld [vmem:[%s3 + $0x38] sm:$0xff]
  %v66 = vld [vmem:[%s3 + $0x40] sm:$0xff]
  %v67 = vld [vmem:[%s3 + $0x48] sm:$0xff]
  %v68 = vld [vmem:[%s3 + $0x50] sm:$0xff]
  %v69 = vld [vmem:[%s3 + $0x58] sm:$0xff]
  %v70 = vld [vmem:[%s3 + $0x60] sm:$0xff]
  %v71 = vld [vmem:[%s3 + $0x68] sm:$0xff]
  %v72 = vld [vmem:[%s3 + $0x70] sm:$0xff]
  %v73 = vld [vmem:[%s3 + $0x78] sm:$0xff]
  %v74 = vld [vmem:[%s4] sm:$0x1]
  %v76 = vperm.slane %v74, 0
  %78 = vmatpush.msra.mxu0 %v73
  %79 = vmatpush.msra.mxu0 %v72
  %80 = vmatpush.msra.mxu0 %v71
  %81 = vmatpush.msra.mxu0 %v70
  %82 = vmatpush.msra.mxu0 %v69
  %83 = vmatpush.msra.mxu0 %v68
  %84 = vmatpush.msra.mxu0 %v67
  %85 = vmatpush.msra.mxu0 %v66
  %86 = vmatpush.msra.mxu0 %v65
  %87 = vmatpush.msra.mxu0 %v64
  %88 = vmatpush.msra.mxu0 %v63
  %89 = vmatpush.msra.mxu0 %v62
  %90 = vmatpush.msra.mxu0 %v61
  %91 = vmatpush.msra.mxu0 %v60
  %92 = vmatpush.msra.mxu0 %v59
  %93 = vmatpush.msra.mxu0 %v58
  %94 = vmatmul.f32.gmra.mxu0 %v57
  %v95 = vpop.f32.mrf.mxu0
  %v96 = vadd.f32 %v76, %v95
  %97 = vdwg.mxu0
  %vm98 = vcmask 31744
  %99 = vst.msk [vmem:[%s5] sm:$0xff] %vm98, %v96
  // Predicated region
  $region22: #{qnet_forward.1} parent=0 // pred_check
    _
  $region23: #{qnet_forward.1} parent=0 // pred_check_branch
    %101 = sbr.rel (0) target = $region25
  $region24: #{qnet_forward.1} parent=0 // pred_region
    _
  $region25: #{qnet_forward.1} parent=0 // pred_fallthru
    _
  // Predicated region
  $region26: #{qnet_forward.1} parent=0 // pred_check
    _
  $region27: #{qnet_forward.1} parent=0 // pred_check_branch
    %103 = sbr.rel (0) target = $region29
  $region28: #{qnet_forward.1} parent=0 // pred_region
    _
  $region29: #{qnet_forward.1} parent=0 // pred_fallthru
    _

</llo_original>
